<compile_context>
chip_gen: v5e
topology: v5e:2x2
jax: 0.10.0
libtpu: 0.0.40
codegen_flags: <defaults>
</compile_context>

<pallas_src>
import numpy as np
import jax
import jax.numpy as jnp
from jax.experimental import pallas as pl
from jax.experimental.pallas import tpu as pltpu

NEG = -1e9  # finite stand-in for -inf in additive log-masks


def _round_up(x, m):
    return ((x + m - 1) // m) * m


# --------------------------------------------------------------------------- #
# Fused kernel: name + mention + utterance + combine
# --------------------------------------------------------------------------- #
def _fused_kernel(CBp, Mp, Cp):
    """Kernel factory (padded sizes baked in via closure).

    Grid axis 0 tiles the flattened token axis T.  Scratch holds the online
    softmax state (running max / denominator / numerator) for all
    R = CBp + Mp + Cp attention rows at once.
    """
    last_utt = CBp + Mp

    def kernel(mask_ref, story_ref, w_ref, tsel_ref, nsel_ref, msel_ref,
               hm_ref, hu_ref, b_ref, out_ref, m_s, l_s, acc_s):
        t = pl.program_id(0)

        @pl.when(t == 0)
        def _init():
            m_s[...] = jnp.full_like(m_s, -jnp.inf)
            l_s[...] = jnp.zeros_like(l_s)
            acc_s[...] = jnp.zeros_like(acc_s)

        story_c = story_ref[...]                                   # [tT, Hp]
        w = w_ref[...]                                             # [8, Hp]

        # All three token-score projections in ONE MXU op; scores land with T
        # on the lane axis, matching the [R, tT] mask layout (q@k^T pattern).
        scores = jax.lax.dot_general(
            w, story_c, (((1,), (1,)), ((), ())),
            preferred_element_type=jnp.float32)                    # [8, tT]
        # Route score row 0/1/2 to the name/mention/utterance attention rows.
        tok = jnp.dot(tsel_ref[...], scores,
                      preferred_element_type=jnp.float32)          # [R, tT]

        logits = mask_ref[...] + tok                               # [R, tT]

        # ---- online softmax update (flash-attention style) ------------------
        m_prev = m_s[...]
        m_new = jnp.maximum(m_prev, jnp.max(logits, axis=1, keepdims=True))
        alpha = jnp.exp(m_prev - m_new)
        p = jnp.exp(logits - m_new)
        l_s[...] = alpha * l_s[...] + jnp.sum(p, axis=1, keepdims=True)
        acc_s[...] = alpha * acc_s[...] + jnp.dot(
            p, story_c, preferred_element_type=jnp.float32)
        m_s[...] = m_new

        # ---- epilogue: row-level aggregation + combine (runs once) ----------
        @pl.when(t == pl.num_programs(0) - 1)
        def _finalize():
            emb = acc_s[...] * pl.reciprocal(l_s[...], approx=True)   # [R, Hp]

            # name / mention / combine projections of all row embeddings,
            # again one MXU op: [8, Hp] x [R, Hp]^T -> [8, R].
            row_scores = jax.lax.dot_general(
                w, emb, (((1,), (1,)), ((), ())),
                preferred_element_type=jnp.float32)
            b_name, b_ment, b_comb = b_ref[0], b_ref[1], b_ref[2]

            def masked_softmax(sel_mask, score_row):
                lg = sel_mask + score_row                             # [Cp, R]
                lg = lg - jnp.max(lg, axis=1, keepdims=True)
                e = jnp.exp(lg)
                return e * pl.reciprocal(jnp.sum(e, axis=1, keepdims=True),
                                         approx=True)

            # name: softmax over each character's B block-rows
            n_attn = masked_softmax(nsel_ref[...], row_scores[3:4, :] + b_name)
            name_ch = jnp.dot(n_attn, emb, preferred_element_type=jnp.float32)

            # mention: softmax over each character's mention rows; characters
            # without mentions are zeroed via hm (matches the torch zeros init)
            m_attn = masked_softmax(msel_ref[...], row_scores[4:5, :] + b_ment)
            ment_ch = jnp.dot(m_attn, emb,
                              preferred_element_type=jnp.float32) * hm_ref[...]

            # utterance rows are already one per character; hu zeroes the rows
            # of characters without utterances (matches nan_to_num(0) path)
            utt_ch = emb[last_utt:last_utt + Cp, :] * hu_ref[...]

            # combine the three representations (tiny [Cp, Hp] epilogue;
            # single-vreg VPU reduces are fine here)
            w_c = w[5:6, :]
            s0 = jnp.sum(name_ch * w_c, axis=-1, keepdims=True) + b_comb
            s1 = (jnp.sum(ment_ch * w_c, axis=-1, keepdims=True) + b_comb
                  + jnp.where(hm_ref[...] > 0.0, 0.0, NEG))
            s2 = (jnp.sum(utt_ch * w_c, axis=-1, keepdims=True) + b_comb
                  + jnp.where(hu_ref[...] > 0.0, 0.0, NEG))
            mx = jnp.maximum(jnp.maximum(s0, s1), s2)
            e0 = jnp.exp(s0 - mx)
            e1 = jnp.exp(s1 - mx)
            e2 = jnp.exp(s2 - mx)
            inv = pl.reciprocal(e0 + e1 + e2, approx=True)
            out_ref[...] = ((e0 * name_ch + e1 * ment_ch + e2 * utt_ch)
                            * inv).astype(out_ref.dtype)

    return kernel


# --------------------------------------------------------------------------- #
# Parameters + full forward
# --------------------------------------------------------------------------- #
def init_params(key, vocab_size, hidden):
    keys = jax.random.split(key, 13)

    def lin(kw, kb):
        w = (jax.random.normal(kw, (1, hidden), jnp.float32)
             / jnp.sqrt(jnp.float32(hidden)))
        b = jax.random.normal(kb, (1, 1), jnp.float32) * 0.01
        return w, b

    params = {"embed_table": jax.random.normal(keys[0], (vocab_size, hidden),
                                               jnp.float32) * 0.1}
    names = ["name_token", "name", "mention_token", "mention", "utterance",
             "combine"]
    for i, nm in enumerate(names):
        w, b = lin(keys[1 + 2 * i], keys[2 + 2 * i])
        params[f"w_{nm}"] = w
        params[f"b_{nm}"] = b
    return params


def label_independent_forward(params, story_input_ids, names_mask,
                              utterances_mask, mentions_mask,
                              mention_character_ids, *, token_chunk=512):
    f32 = jnp.float32

    # "Encoder": deterministic embedding lookup (plain JAX glue).
    story = params["embed_table"][story_input_ids]            # [B, S, H]
    B, S, H = story.shape
    C = names_mask.shape[0]
    M = mentions_mask.shape[0]
    T = B * S

    # ---- (8, 128)-aligned padded sizes --------------------------------------
    Cp = _round_up(C, 8)
    Mp = _round_up(M, 8)
    Hp = _round_up(H, 128)
    CBp = Cp * B                      # one "name" attention row per (char, block)
    R = CBp + Mp + Cp                 # all attention rows, stacked

    tT = min(_round_up(max(token_chunk, 128), 128), _round_up(T, 128))
    Tp = _round_up(T, tT)
    n_chunks = Tp // tT

    # ---- padded, lane-dense operands (wrapper-side glue, plain JAX) ---------
    story_p = jnp.zeros((Tp, Hp), f32).at[:T, :H].set(
        story.reshape(T, H).astype(f32))

    t_idx = jnp.arange(Tp)
    blk = t_idx // S
    valid = t_idx < T
    nm_p = jnp.full((Cp, S), NEG, f32).at[:C].set(names_mask.astype(f32))
    nm_tok = nm_p[:, t_idx % S]                                        # [Cp, Tp]
    # block-diagonal name mask: row (c, b) keeps only tokens of block b
    name_rows = jnp.where(
        (blk[None, None, :] == jnp.arange(B)[None, :, None])
        & valid[None, None, :],
        nm_tok[:, None, :], NEG).reshape(CBp, Tp)
    ment_rows = jnp.full((Mp, Tp), NEG, f32).at[:M, :T].set(
        mentions_mask.astype(f32))
    utt_rows = jnp.full((Cp, Tp), NEG, f32).at[:C, :T].set(
        utterances_mask.astype(f32))

    # token-level biases are uniform per softmax row -> fold them into the
    # additive masks (output is mathematically unchanged)
    mask_all = jnp.concatenate([
        name_rows + params["b_name_token"][0, 0],
        ment_rows + params["b_mention_token"][0, 0],
        utt_rows + params["b_utterance"][0, 0],
    ], axis=0)                                                         # [R, Tp]

    # routes each attention row to its token-score projection (0/1/2)
    tok_sel = jnp.zeros((R, 8), f32)
    tok_sel = tok_sel.at[:CBp, 0].set(1.0)
    tok_sel = tok_sel.at[CBp:CBp + Mp, 1].set(1.0)
    tok_sel = tok_sel.at[CBp + Mp:, 2].set(1.0)

    # per-character row-selection log-masks for the second-level softmaxes
    r_idx = jnp.arange(R)[None, :]
    c_idx = jnp.arange(Cp)[:, None]
    name_sel = jnp.where((r_idx >= c_idx * B) & (r_idx < (c_idx + 1) * B),
                         0.0, NEG).astype(f32)                         # [Cp, R]
    cm = mention_character_ids[None, :] == jnp.arange(Cp)[:, None]     # [Cp, M]
    cm_sel = jnp.full((Cp, R), NEG, f32).at[:, CBp:CBp + M].set(
        jnp.where(cm, 0.0, NEG))
    hm = jnp.any(cm, axis=1, keepdims=True).astype(f32)                # [Cp, 1]
    hu = jnp.zeros((Cp, 1), f32).at[:C].set(
        jnp.any(utterances_mask == 0.0, axis=1, keepdims=True).astype(f32))

    # all six Linear(H -> 1) weight rows packed into one lane-dense [8, Hp] slab
    W = jnp.zeros((8, Hp), f32)
    W = W.at[0, :H].set(params["w_name_token"][0])
    W = W.at[1, :H].set(params["w_mention_token"][0])
    W = W.at[2, :H].set(params["w_utterance"][0])
    W = W.at[3, :H].set(params["w_name"][0])
    W = W.at[4, :H].set(params["w_mention"][0])
    W = W.at[5, :H].set(params["w_combine"][0])

    # embedding-level biases -> SMEM scalars
    b_sm = jnp.array([params["b_name"][0, 0], params["b_mention"][0, 0],
                      params["b_combine"][0, 0], 0.0], f32)

    # ---- fused pallas_call ---------------------------------------------------
    est_bytes = 4 * (2 * (R + Hp) * tT        # double-buffered mask/story tiles
                     + R * (Hp + 2)           # online-softmax scratch
                     + 2 * Cp * R + 9 * Hp + 4 * Cp + Cp * Hp)
    vmem_limit_bytes = int(min(max(6 * est_bytes, 32 * 2**20), 64 * 2**20))

    out_p = pl.pallas_call(
        _fused_kernel(CBp, Mp, Cp),
        out_shape=jax.ShapeDtypeStruct((Cp, Hp), f32),
        grid_spec=pltpu.PrefetchScalarGridSpec(
            num_scalar_prefetch=0,
            grid=(n_chunks,),
            in_specs=[
                pl.BlockSpec((R, tT), lambda t: (0, t)),        # mask_all
                pl.BlockSpec((tT, Hp), lambda t: (t, 0)),       # story tile
                pl.BlockSpec((8, Hp), lambda t: (0, 0)),        # packed weights
                pl.BlockSpec((R, 8), lambda t: (0, 0)),         # tok_sel
                pl.BlockSpec((Cp, R), lambda t: (0, 0)),        # name_sel
                pl.BlockSpec((Cp, R), lambda t: (0, 0)),        # cm_sel
                pl.BlockSpec((Cp, 1), lambda t: (0, 0)),        # has_mention
                pl.BlockSpec((Cp, 1), lambda t: (0, 0)),        # has_utterance
                pl.BlockSpec(memory_space=pltpu.MemorySpace.SMEM),  # biases
            ],
            out_specs=pl.BlockSpec((Cp, Hp), lambda t: (0, 0)),
            scratch_shapes=[
                pltpu.VMEM((R, 1), jnp.float32),    # running max
                pltpu.VMEM((R, 1), jnp.float32),    # running denominator
                pltpu.VMEM((R, Hp), jnp.float32),   # running numerator
            ],
        ),
        compiler_params=pltpu.CompilerParams(
            dimension_semantics=("arbitrary",),     # T is a reduction axis
            vmem_limit_bytes=vmem_limit_bytes,
        ),
    )(mask_all, story_p, W, tok_sel, name_sel, cm_sel, hm, hu, b_sm)

    return out_p[:C, :H]


# --------------------------------------------------------------------------- #
# Pure-JAX/numpy reference (sanity check)
# --------------------------------------------------------------------------- #
def reference_forward(params, story_input_ids, names_mask, utterances_mask,
                      mentions_mask, mention_character_ids):
    def lin(x, w, b):
        return jnp.sum(x * w[0], axis=-1) + b[0, 0]

    story = params["embed_table"][story_input_ids]
    B, S, H = story.shape
    C = names_mask.shape[0]
    T = B * S
    sf = story.reshape(T, H)

    # names
    tok = lin(story, params["w_name_token"], params["b_name_token"])      # [B,S]
    attn = jax.nn.softmax(tok[None] + names_mask[:, None, :], axis=2)     # [C,B,S]
    nemb = jnp.einsum('cbs,bsh->cbh', attn, story)                        # [C,B,H]
    nattn = jax.nn.softmax(lin(nemb, params["w_name"], params["b_name"]), axis=1)
    name_emb = jnp.einsum('cb,cbh->ch', nattn, nemb)

    # mentions
    mtok = lin(sf, params["w_mention_token"], params["b_mention_token"])  # [T]
    mattn = jax.nn.softmax(mentions_mask + mtok[None, :], axis=1)
    memb = mattn @ sf                                                     # [M,H]
    mscore = lin(memb, params["w_mention"], params["b_mention"])          # [M]
    ment_emb = np.zeros((C, H), np.float32)
    ids_np = np.asarray(mention_character_ids)
    for c in np.unique(ids_np):
        idx = np.where(ids_np == c)[0]
        a = jax.nn.softmax(mscore[idx])
        ment_emb[c] = np.asarray(a @ memb[idx])
    ment_emb = jnp.asarray(ment_emb)

    # utterances
    uscore = lin(sf, params["w_utterance"], params["b_utterance"])        # [T]
    uattn = jax.nn.softmax(utterances_mask + uscore[None, :], axis=1)
    has_u = jnp.any(utterances_mask == 0.0, axis=1, keepdims=True)
    utt_emb = jnp.where(has_u, uattn @ sf, 0.0)

    # combine
    has_m = jnp.isin(jnp.arange(C), mention_character_ids)
    s0 = lin(name_emb, params["w_combine"], params["b_combine"])
    s1 = lin(ment_emb, params["w_combine"], params["b_combine"]) + jnp.where(has_m, 0.0, NEG)
    s2 = lin(utt_emb, params["w_combine"], params["b_combine"]) + jnp.where(has_u[:, 0], 0.0, NEG)
    score = jnp.stack([s0, s1, s2], axis=1)
    cattn = jax.nn.softmax(score, axis=1)
    embs = jnp.stack([name_emb, ment_emb, utt_emb], axis=1)
    return jnp.einsum('ck,ckh->ch', cattn, embs)


# --------------------------------------------------------------------------- #
if __name__ == "__main__":
    key = jax.random.PRNGKey(0)
    B, S, H = 2, 96, 32          # n_blocks, seq_len, hidden_size
    C, M = 4, 6                  # n_characters, n_mentions
    T = B * S
    VOCAB = 100

    k_param, k_ids = jax.random.split(key)
    params = init_params(k_param, VOCAB, H)

    story_input_ids = jax.random.randint(k_ids, (B, S), 0, VOCAB, jnp.int32)

    names_mask = np.full((C, S), NEG, np.float32)
    for c in range(C):
        names_mask[c, 3 * c:3 * c + 2] = 0.0

    utterances_mask = np.full((C, T), NEG, np.float32)
    for c in (0, 2):                       # chars 1, 3 have no utterances
        utterances_mask[c, 5 * c:5 * c + 7] = 0.0

    mentions_mask = np.full((M, T), NEG, np.float32)
    for m in range(M):
        mentions_mask[m, 4 * m:4 * m + 3] = 0.0

    mention_character_ids = jnp.array([0, 0, 1, 1, 3, 3], jnp.int32)  # char 2: none

    names_mask = jnp.asarray(names_mask)
    utterances_mask = jnp.asarray(utterances_mask)
    mentions_mask = jnp.asarray(mentions_mask)

    # token_chunk=128 -> T=192 pads to 256 -> 2 grid steps (exercises the
    # online-softmax accumulation across tiles).
    out = label_independent_forward(params, story_input_ids, names_mask,
                                    utterances_mask, mentions_mask,
                                    mention_character_ids, token_chunk=128)
    out = jax.block_until_ready(out)
    assert out.shape == (C, H)

    ref = reference_forward(params, story_input_ids, names_mask,
                            utterances_mask, mentions_mask,
                            mention_character_ids)
    # tolerance slightly loosened for the approximate (EUP) reciprocals used
    # in the softmax normalizations
    np.testing.assert_allclose(np.asarray(out), np.asarray(ref),
                               rtol=5e-3, atol=2e-3)

    print("KERNEL_OK")
</pallas_src>

<mosaic_0001>
module attributes {stable_mosaic.version = 11 : i64} {
  func.func @kernel(%arg0: i32, %arg1: memref<32x128xf32, #tpu.memory_space<vmem>>, %arg2: memref<128x128xf32, #tpu.memory_space<vmem>>, %arg3: memref<8x128xf32, #tpu.memory_space<vmem>>, %arg4: memref<32x8xf32, #tpu.memory_space<vmem>>, %arg5: memref<8x32xf32, #tpu.memory_space<vmem>>, %arg6: memref<8x32xf32, #tpu.memory_space<vmem>>, %arg7: memref<8x1xf32, #tpu.memory_space<vmem>>, %arg8: memref<8x1xf32, #tpu.memory_space<vmem>>, %arg9: memref<4xf32, #tpu.memory_space<smem>>, %arg10: memref<8x128xf32, #tpu.memory_space<vmem>>, %arg11: memref<32x1xf32, #tpu.memory_space<vmem>>, %arg12: memref<32x1xf32, #tpu.memory_space<vmem>>, %arg13: memref<32x128xf32, #tpu.memory_space<vmem>>) attributes {dimension_semantics = [#tpu.dimension_semantics<arbitrary>], iteration_bounds = array<i64: 2>, scalar_prefetch = 0 : i64, scratch_operands = 3 : i64, tpu.core_type = #tpu.core_type<tc>, window_params = [{transform_indices = @transform_0, window_bounds = array<i64: 32, 128>}, {transform_indices = @transform_1, window_bounds = array<i64: 128, 128>}, {pipeline_mode = #tpu.pipeline_mode<synchronous>, transform_indices = @transform_2, window_bounds = array<i64: 8, 128>}, {pipeline_mode = #tpu.pipeline_mode<synchronous>, transform_indices = @transform_3, window_bounds = array<i64: 32, 8>}, {pipeline_mode = #tpu.pipeline_mode<synchronous>, transform_indices = @transform_4, window_bounds = array<i64: 8, 32>}, {pipeline_mode = #tpu.pipeline_mode<synchronous>, transform_indices = @transform_5, window_bounds = array<i64: 8, 32>}, {pipeline_mode = #tpu.pipeline_mode<synchronous>, transform_indices = @transform_6, window_bounds = array<i64: 8, 1>}, {pipeline_mode = #tpu.pipeline_mode<synchronous>, transform_indices = @transform_7, window_bounds = array<i64: 8, 1>}, {transform_indices = @transform_8, window_bounds = array<i64: 4>}, {pipeline_mode = #tpu.pipeline_mode<synchronous>, transform_indices = @transform_9, window_bounds = array<i64: 8, 128>}]} {
    %c0_i32 = arith.constant 0 : i32
    %0 = arith.cmpi eq, %arg0, %c0_i32 : i32
    %1 = arith.extui %0 : i1 to i32
    %c0_i32_0 = arith.constant 0 : i32
    %2 = arith.cmpi ne, %1, %c0_i32_0 : i32
    scf.if %2 {
      %cst_25 = arith.constant 0xFF800000 : f32
      %35 = vector.broadcast %cst_25 : f32 to vector<32x1xf32>
      %c0_26 = arith.constant 0 : index
      %c0_27 = arith.constant 0 : index
      %36 = vector.load %arg11[%c0_26, %c0_27] : memref<32x1xf32, #tpu.memory_space<vmem>>, vector<32x1xf32>
      tpu.vector_store %arg11[%c0_26, %c0_27], %35 {strides = array<i32>} : memref<32x1xf32, #tpu.memory_space<vmem>>, vector<32x1xf32>,
      %cst_28 = arith.constant 0.000000e+00 : f32
      %37 = vector.broadcast %cst_28 : f32 to vector<32x1xf32>
      %c0_29 = arith.constant 0 : index
      %c0_30 = arith.constant 0 : index
      %38 = vector.load %arg12[%c0_29, %c0_30] : memref<32x1xf32, #tpu.memory_space<vmem>>, vector<32x1xf32>
      tpu.vector_store %arg12[%c0_29, %c0_30], %37 {strides = array<i32>} : memref<32x1xf32, #tpu.memory_space<vmem>>, vector<32x1xf32>,
      %cst_31 = arith.constant 0.000000e+00 : f32
      %39 = vector.broadcast %cst_31 : f32 to vector<32x128xf32>
      %c0_32 = arith.constant 0 : index
      %c0_33 = arith.constant 0 : index
      %40 = vector.load %arg13[%c0_32, %c0_33] : memref<32x128xf32, #tpu.memory_space<vmem>>, vector<32x128xf32>
      tpu.vector_store %arg13[%c0_32, %c0_33], %39 {strides = array<i32>} : memref<32x128xf32, #tpu.memory_space<vmem>>, vector<32x128xf32>,
    } else {
    }
    %c0 = arith.constant 0 : index
    %c0_1 = arith.constant 0 : index
    %3 = vector.load %arg2[%c0, %c0_1] : memref<128x128xf32, #tpu.memory_space<vmem>>, vector<128x128xf32>
    %c0_2 = arith.constant 0 : index
    %c0_3 = arith.constant 0 : index
    %4 = vector.load %arg3[%c0_2, %c0_3] : memref<8x128xf32, #tpu.memory_space<vmem>>, vector<8x128xf32>
    %cst = arith.constant dense<0.000000e+00> : vector<8x128xf32>
    %5 = tpu.matmul %4, %3, %cst {dimension_numbers = #tpu.dot_dimension_numbers<[1], [1], [0], [0], [0, 0, 1, 0], [], []>} : vector<8x128xf32>, vector<128x128xf32>, vector<8x128xf32> -> vector<8x128xf32>
    %c0_4 = arith.constant 0 : index
    %c0_5 = arith.constant 0 : index
    %6 = vector.load %arg4[%c0_4, %c0_5] : memref<32x8xf32, #tpu.memory_space<vmem>>, vector<32x8xf32>
    %cst_6 = arith.constant dense<0.000000e+00> : vector<32x128xf32>
    %7 = tpu.matmul %6, %5, %cst_6 {dimension_numbers = #tpu.dot_dimension_numbers<[1], [0], [0], [1], [0, 0, 1, 1], [], []>} : vector<32x8xf32>, vector<8x128xf32>, vector<32x128xf32> -> vector<32x128xf32>
    %c0_7 = arith.constant 0 : index
    %c0_8 = arith.constant 0 : index
    %8 = vector.load %arg1[%c0_7, %c0_8] : memref<32x128xf32, #tpu.memory_space<vmem>>, vector<32x128xf32>
    %9 = arith.addf %8, %7 : vector<32x128xf32>
    %c0_9 = arith.constant 0 : index
    %c0_10 = arith.constant 0 : index
    %10 = vector.load %arg11[%c0_9, %c0_10] : memref<32x1xf32, #tpu.memory_space<vmem>>, vector<32x1xf32>
    %cst_11 = arith.constant dense<0xFF800000> : vector<32xf32>
    %11 = vector.multi_reduction <maximumf>, %9, %cst_11 [1] : vector<32x128xf32> to vector<32xf32>
    %12 = vector.shape_cast %11 : vector<32xf32> to vector<32x1xf32>
    %13 = arith.maximumf %10, %12 : vector<32x1xf32>
    %14 = arith.subf %10, %13 : vector<32x1xf32>
    %15 = math.exp %14 : vector<32x1xf32>
    %16 = vector.broadcast %13 : vector<32x1xf32> to vector<32x128xf32>
    %17 = arith.subf %9, %16 : vector<32x128xf32>
    %18 = math.exp %17 : vector<32x128xf32>
    %c0_12 = arith.constant 0 : index
    %c0_13 = arith.constant 0 : index
    %19 = vector.load %arg12[%c0_12, %c0_13] : memref<32x1xf32, #tpu.memory_space<vmem>>, vector<32x1xf32>
    %20 = arith.mulf %15, %19 : vector<32x1xf32>
    %cst_14 = arith.constant dense<0.000000e+00> : vector<32xf32>
    %21 = vector.multi_reduction <add>, %18, %cst_14 [1] : vector<32x128xf32> to vector<32xf32>
    %22 = vector.shape_cast %21 : vector<32xf32> to vector<32x1xf32>
    %23 = arith.addf %20, %22 : vector<32x1xf32>
    %c0_15 = arith.constant 0 : index
    %c0_16 = arith.constant 0 : index
    %24 = vector.load %arg12[%c0_15, %c0_16] : memref<32x1xf32, #tpu.memory_space<vmem>>, vector<32x1xf32>
    tpu.vector_store %arg12[%c0_15, %c0_16], %23 {strides = array<i32>} : memref<32x1xf32, #tpu.memory_space<vmem>>, vector<32x1xf32>,
    %c0_17 = arith.constant 0 : index
    %c0_18 = arith.constant 0 : index
    %25 = vector.load %arg13[%c0_17, %c0_18] : memref<32x128xf32, #tpu.memory_space<vmem>>, vector<32x128xf32>
    %26 = vector.broadcast %15 : vector<32x1xf32> to vector<32x128xf32>
    %27 = arith.mulf %26, %25 : vector<32x128xf32>
    %cst_19 = arith.constant dense<0.000000e+00> : vector<32x128xf32>
    %28 = tpu.matmul %18, %3, %cst_19 {dimension_numbers = #tpu.dot_dimension_numbers<[1], [0], [0], [1], [0, 0, 1, 1], [], []>} : vector<32x128xf32>, vector<128x128xf32>, vector<32x128xf32> -> vector<32x128xf32>
    %29 = arith.addf %27, %28 : vector<32x128xf32>
    %c0_20 = arith.constant 0 : index
    %c0_21 = arith.constant 0 : index
    %30 = vector.load %arg13[%c0_20, %c0_21] : memref<32x128xf32, #tpu.memory_space<vmem>>, vector<32x128xf32>
    tpu.vector_store %arg13[%c0_20, %c0_21], %29 {strides = array<i32>} : memref<32x128xf32, #tpu.memory_space<vmem>>, vector<32x128xf32>,
    %c0_22 = arith.constant 0 : index
    %c0_23 = arith.constant 0 : index
    %31 = vector.load %arg11[%c0_22, %c0_23] : memref<32x1xf32, #tpu.memory_space<vmem>>, vector<32x1xf32>
    tpu.vector_store %arg11[%c0_22, %c0_23], %13 {strides = array<i32>} : memref<32x1xf32, #tpu.memory_space<vmem>>, vector<32x1xf32>,
    %c1_i32 = arith.constant 1 : i32
    %32 = arith.cmpi eq, %arg0, %c1_i32 : i32
    %33 = arith.extui %32 : i1 to i32
    %c0_i32_24 = arith.constant 0 : i32
    %34 = arith.cmpi ne, %33, %c0_i32_24 : i32
    scf.if %34 {
      %c0_25 = arith.constant 0 : index
      %c0_26 = arith.constant 0 : index
      %35 = vector.load %arg13[%c0_25, %c0_26] : memref<32x128xf32, #tpu.memory_space<vmem>>, vector<32x128xf32>
      %c0_27 = arith.constant 0 : index
      %c0_28 = arith.constant 0 : index
      %36 = vector.load %arg12[%c0_27, %c0_28] : memref<32x1xf32, #tpu.memory_space<vmem>>, vector<32x1xf32>
      %37 = tpu.reciprocal %36 {approx = true} : vector<32x1xf32> -> vector<32x1xf32>
      %38 = vector.broadcast %37 : vector<32x1xf32> to vector<32x128xf32>
      %39 = arith.mulf %35, %38 : vector<32x128xf32>
      %cst_29 = arith.constant dense<0.000000e+00> : vector<8x32xf32>
      %40 = tpu.matmul %4, %39, %cst_29 {dimension_numbers = #tpu.dot_dimension_numbers<[1], [1], [0], [0], [0, 0, 1, 0], [], []>} : vector<8x128xf32>, vector<32x128xf32>, vector<8x32xf32> -> vector<8x32xf32>
      %c0_30 = arith.constant 0 : index
      %41 = memref.load %arg9[%c0_30] : memref<4xf32, #tpu.memory_space<smem>>
      %c1 = arith.constant 1 : index
      %42 = memref.load %arg9[%c1] : memref<4xf32, #tpu.memory_space<smem>>
      %c2 = arith.constant 2 : index
      %43 = memref.load %arg9[%c2] : memref<4xf32, #tpu.memory_space<smem>>
      %c0_31 = arith.constant 0 : index
      %c0_32 = arith.constant 0 : index
      %44 = vector.load %arg5[%c0_31, %c0_32] : memref<8x32xf32, #tpu.memory_space<vmem>>, vector<8x32xf32>
      %45 = vector.extract_strided_slice %40 {offsets = [3, 0], sizes = [1, 32], strides = [1, 1]} : vector<8x32xf32> to vector<1x32xf32>
      %46 = vector.broadcast %41 : f32 to vector<1x32xf32>
      %47 = arith.addf %45, %46 : vector<1x32xf32>
      %48 = vector.broadcast %47 : vector<1x32xf32> to vector<8x32xf32>
      %49 = arith.addf %44, %48 : vector<8x32xf32>
      %cst_33 = arith.constant dense<0xFF800000> : vector<8xf32>
      %50 = vector.multi_reduction <maximumf>, %49, %cst_33 [1] : vector<8x32xf32> to vector<8xf32>
      %51 = vector.shape_cast %50 : vector<8xf32> to vector<8x1xf32>
      %52 = vector.broadcast %51 : vector<8x1xf32> to vector<8x32xf32>
      %53 = arith.subf %49, %52 : vector<8x32xf32>
      %54 = math.exp %53 : vector<8x32xf32>
      %cst_34 = arith.constant dense<0.000000e+00> : vector<8xf32>
      %55 = vector.multi_reduction <add>, %54, %cst_34 [1] : vector<8x32xf32> to vector<8xf32>
      %56 = vector.shape_cast %55 : vector<8xf32> to vector<8x1xf32>
      %57 = tpu.reciprocal %56 {approx = true} : vector<8x1xf32> -> vector<8x1xf32>
      %58 = vector.broadcast %57 : vector<8x1xf32> to vector<8x32xf32>
      %59 = arith.mulf %54, %58 : vector<8x32xf32>
      %cst_35 = arith.constant dense<0.000000e+00> : vector<8x128xf32>
      %60 = tpu.matmul %59, %39, %cst_35 {dimension_numbers = #tpu.dot_dimension_numbers<[1], [0], [0], [1], [0, 0, 1, 1], [], []>} : vector<8x32xf32>, vector<32x128xf32>, vector<8x128xf32> -> vector<8x128xf32>
      %c0_36 = arith.constant 0 : index
      %c0_37 = arith.constant 0 : index
      %61 = vector.load %arg6[%c0_36, %c0_37] : memref<8x32xf32, #tpu.memory_space<vmem>>, vector<8x32xf32>
      %62 = vector.extract_strided_slice %40 {offsets = [4, 0], sizes = [1, 32], strides = [1, 1]} : vector<8x32xf32> to vector<1x32xf32>
      %63 = vector.broadcast %42 : f32 to vector<1x32xf32>
      %64 = arith.addf %62, %63 : vector<1x32xf32>
      %65 = vector.broadcast %64 : vector<1x32xf32> to vector<8x32xf32>
      %66 = arith.addf %61, %65 : vector<8x32xf32>
      %cst_38 = arith.constant dense<0xFF800000> : vector<8xf32>
      %67 = vector.multi_reduction <maximumf>, %66, %cst_38 [1] : vector<8x32xf32> to vector<8xf32>
      %68 = vector.shape_cast %67 : vector<8xf32> to vector<8x1xf32>
      %69 = vector.broadcast %68 : vector<8x1xf32> to vector<8x32xf32>
      %70 = arith.subf %66, %69 : vector<8x32xf32>
      %71 = math.exp %70 : vector<8x32xf32>
      %cst_39 = arith.constant dense<0.000000e+00> : vector<8xf32>
      %72 = vector.multi_reduction <add>, %71, %cst_39 [1] : vector<8x32xf32> to vector<8xf32>
      %73 = vector.shape_cast %72 : vector<8xf32> to vector<8x1xf32>
      %74 = tpu.reciprocal %73 {approx = true} : vector<8x1xf32> -> vector<8x1xf32>
      %75 = vector.broadcast %74 : vector<8x1xf32> to vector<8x32xf32>
      %76 = arith.mulf %71, %75 : vector<8x32xf32>
      %cst_40 = arith.constant dense<0.000000e+00> : vector<8x128xf32>
      %77 = tpu.matmul %76, %39, %cst_40 {dimension_numbers = #tpu.dot_dimension_numbers<[1], [0], [0], [1], [0, 0, 1, 1], [], []>} : vector<8x32xf32>, vector<32x128xf32>, vector<8x128xf32> -> vector<8x128xf32>
      %c0_41 = arith.constant 0 : index
      %c0_42 = arith.constant 0 : index
      %78 = vector.load %arg7[%c0_41, %c0_42] : memref<8x1xf32, #tpu.memory_space<vmem>>, vector<8x1xf32>
      %79 = vector.broadcast %78 : vector<8x1xf32> to vector<8x128xf32>
      %80 = arith.mulf %77, %79 : vector<8x128xf32>
      %81 = vector.extract_strided_slice %39 {offsets = [24, 0], sizes = [8, 128], strides = [1, 1]} : vector<32x128xf32> to vector<8x128xf32>
      %c0_43 = arith.constant 0 : index
      %c0_44 = arith.constant 0 : index
      %82 = vector.load %arg8[%c0_43, %c0_44] : memref<8x1xf32, #tpu.memory_space<vmem>>, vector<8x1xf32>
      %83 = vector.broadcast %82 : vector<8x1xf32> to vector<8x128xf32>
      %84 = arith.mulf %81, %83 : vector<8x128xf32>
      %85 = vector.extract_strided_slice %4 {offsets = [5, 0], sizes = [1, 128], strides = [1, 1]} : vector<8x128xf32> to vector<1x128xf32>
      %86 = vector.broadcast %85 : vector<1x128xf32> to vector<8x128xf32>
      %87 = arith.mulf %60, %86 : vector<8x128xf32>
      %cst_45 = arith.constant dense<0.000000e+00> : vector<8xf32>
      %88 = vector.multi_reduction <add>, %87, %cst_45 [1] : vector<8x128xf32> to vector<8xf32>
      %89 = vector.shape_cast %88 : vector<8xf32> to vector<8x1xf32>
      %90 = vector.broadcast %43 : f32 to vector<8x1xf32>
      %91 = arith.addf %89, %90 : vector<8x1xf32>
      %92 = vector.broadcast %85 : vector<1x128xf32> to vector<8x128xf32>
      %93 = arith.mulf %80, %92 : vector<8x128xf32>
      %cst_46 = arith.constant dense<0.000000e+00> : vector<8xf32>
      %94 = vector.multi_reduction <add>, %93, %cst_46 [1] : vector<8x128xf32> to vector<8xf32>
      %95 = vector.shape_cast %94 : vector<8xf32> to vector<8x1xf32>
      %96 = vector.broadcast %43 : f32 to vector<8x1xf32>
      %97 = arith.addf %95, %96 : vector<8x1xf32>
      %c0_47 = arith.constant 0 : index
      %c0_48 = arith.constant 0 : index
      %98 = vector.load %arg7[%c0_47, %c0_48] : memref<8x1xf32, #tpu.memory_space<vmem>>, vector<8x1xf32>
      %cst_49 = arith.constant 0.000000e+00 : f32
      %99 = vector.broadcast %cst_49 : f32 to vector<8x1xf32>
      %100 = arith.cmpf ogt, %98, %99 : vector<8x1xf32>
      %cst_50 = arith.constant 0.000000e+00 : f32
      %cst_51 = arith.constant -1.000000e+09 : f32
      %101 = vector.broadcast %cst_50 : f32 to vector<8x1xf32>
      %102 = vector.broadcast %cst_51 : f32 to vector<8x1xf32>
      %103 = arith.select %100, %101, %102 : vector<8x1xi1>, vector<8x1xf32>
      %104 = arith.addf %97, %103 : vector<8x1xf32>
      %105 = vector.broadcast %85 : vector<1x128xf32> to vector<8x128xf32>
      %106 = arith.mulf %84, %105 : vector<8x128xf32>
      %cst_52 = arith.constant dense<0.000000e+00> : vector<8xf32>
      %107 = vector.multi_reduction <add>, %106, %cst_52 [1] : vector<8x128xf32> to vector<8xf32>
      %108 = vector.shape_cast %107 : vector<8xf32> to vector<8x1xf32>
      %109 = vector.broadcast %43 : f32 to vector<8x1xf32>
      %110 = arith.addf %108, %109 : vector<8x1xf32>
      %c0_53 = arith.constant 0 : index
      %c0_54 = arith.constant 0 : index
      %111 = vector.load %arg8[%c0_53, %c0_54] : memref<8x1xf32, #tpu.memory_space<vmem>>, vector<8x1xf32>
      %cst_55 = arith.constant 0.000000e+00 : f32
      %112 = vector.broadcast %cst_55 : f32 to vector<8x1xf32>
      %113 = arith.cmpf ogt, %111, %112 : vector<8x1xf32>
      %cst_56 = arith.constant 0.000000e+00 : f32
      %cst_57 = arith.constant -1.000000e+09 : f32
      %114 = vector.broadcast %cst_56 : f32 to vector<8x1xf32>
      %115 = vector.broadcast %cst_57 : f32 to vector<8x1xf32>
      %116 = arith.select %113, %114, %115 : vector<8x1xi1>, vector<8x1xf32>
      %117 = arith.addf %110, %116 : vector<8x1xf32>
      %118 = arith.maximumf %91, %104 : vector<8x1xf32>
      %119 = arith.maximumf %118, %117 : vector<8x1xf32>
      %120 = arith.subf %91, %119 : vector<8x1xf32>
      %121 = math.exp %120 : vector<8x1xf32>
      %122 = arith.subf %104, %119 : vector<8x1xf32>
      %123 = math.exp %122 : vector<8x1xf32>
      %124 = arith.subf %117, %119 : vector<8x1xf32>
      %125 = math.exp %124 : vector<8x1xf32>
      %126 = arith.addf %121, %123 : vector<8x1xf32>
      %127 = arith.addf %126, %125 : vector<8x1xf32>
      %128 = tpu.reciprocal %127 {approx = true} : vector<8x1xf32> -> vector<8x1xf32>
      %129 = vector.broadcast %121 : vector<8x1xf32> to vector<8x128xf32>
      %130 = arith.mulf %129, %60 : vector<8x128xf32>
      %131 = vector.broadcast %123 : vector<8x1xf32> to vector<8x128xf32>
      %132 = arith.mulf %131, %80 : vector<8x128xf32>
      %133 = arith.addf %130, %132 : vector<8x128xf32>
      %134 = vector.broadcast %125 : vector<8x1xf32> to vector<8x128xf32>
      %135 = arith.mulf %134, %84 : vector<8x128xf32>
      %136 = arith.addf %133, %135 : vector<8x128xf32>
      %137 = vector.broadcast %128 : vector<8x1xf32> to vector<8x128xf32>
      %138 = arith.mulf %136, %137 : vector<8x128xf32>
      %c0_58 = arith.constant 0 : index
      %c0_59 = arith.constant 0 : index
      %139 = vector.load %arg10[%c0_58, %c0_59] : memref<8x128xf32, #tpu.memory_space<vmem>>, vector<8x128xf32>
      tpu.vector_store %arg10[%c0_58, %c0_59], %138 {strides = array<i32>} : memref<8x128xf32, #tpu.memory_space<vmem>>, vector<8x128xf32>,
    } else {
    }
    return
  }
  func.func @transform_0(%arg0: i32) -> (i32, i32) {
    %c0_i32 = arith.constant 0 : i32
    %c0_i32_0 = arith.constant 0 : i32
    return %c0_i32, %arg0 : i32, i32
  }
  func.func @transform_1(%arg0: i32) -> (i32, i32) {
    %c0_i32 = arith.constant 0 : i32
    %c0_i32_0 = arith.constant 0 : i32
    return %arg0, %c0_i32 : i32, i32
  }
  func.func @transform_2(%arg0: i32) -> (i32, i32) {
    %c0_i32 = arith.constant 0 : i32
    %c0_i32_0 = arith.constant 0 : i32
    %c0_i32_1 = arith.constant 0 : i32
    return %c0_i32, %c0_i32_0 : i32, i32
  }
  func.func @transform_3(%arg0: i32) -> (i32, i32) {
    %c0_i32 = arith.constant 0 : i32
    %c0_i32_0 = arith.constant 0 : i32
    %c0_i32_1 = arith.constant 0 : i32
    return %c0_i32, %c0_i32_0 : i32, i32
  }
  func.func @transform_4(%arg0: i32) -> (i32, i32) {
    %c0_i32 = arith.constant 0 : i32
    %c0_i32_0 = arith.constant 0 : i32
    %c0_i32_1 = arith.constant 0 : i32
    return %c0_i32, %c0_i32_0 : i32, i32
  }
  func.func @transform_5(%arg0: i32) -> (i32, i32) {
    %c0_i32 = arith.constant 0 : i32
    %c0_i32_0 = arith.constant 0 : i32
    %c0_i32_1 = arith.constant 0 : i32
    return %c0_i32, %c0_i32_0 : i32, i32
  }
  func.func @transform_6(%arg0: i32) -> (i32, i32) {
    %c0_i32 = arith.constant 0 : i32
    %c0_i32_0 = arith.constant 0 : i32
    %c0_i32_1 = arith.constant 0 : i32
    return %c0_i32, %c0_i32_0 : i32, i32
  }
  func.func @transform_7(%arg0: i32) -> (i32, i32) {
    %c0_i32 = arith.constant 0 : i32
    %c0_i32_0 = arith.constant 0 : i32
    %c0_i32_1 = arith.constant 0 : i32
    return %c0_i32, %c0_i32_0 : i32, i32
  }
  func.func @transform_8(%arg0: i32) -> i32 {
    %c0_i32 = arith.constant 0 : i32
    %c0_i32_0 = arith.constant 0 : i32
    return %c0_i32 : i32
  }
  func.func @transform_9(%arg0: i32) -> (i32, i32) {
    %c0_i32 = arith.constant 0 : i32
    %c0_i32_0 = arith.constant 0 : i32
    %c0_i32_1 = arith.constant 0 : i32
    return %c0_i32, %c0_i32_0 : i32, i32
  }
}

</mosaic_0001>

<llo_original>
// kernel: tpu_custom_call.1
$region0: #{tpu_custom_call.1}
  #allocation0 [shape = 'u32[]', space=smem, size = 0x4, offset = 0x4, fixed_abs, tag = 'smem constant byte address 0x4 - core index']
  #allocation1 [shape = 'u32[72,128]{1,0:T(1,128)}', space=vmem, size = 0x9000, scoped, tag = 'internal scratch']
  #allocation2 [shape = 'f32[32,1]{1,0:T(8,128)}', space=vmem, size = 0x4000, scoped, tag = 'scratch operand']
  #allocation3 [shape = 'f32[32,1]{1,0:T(8,128)}', space=vmem, size = 0x4000, scoped, tag = 'scratch operand']
  #allocation4 [shape = 'f32[32,128]{1,0:T(8,128)}', space=vmem, size = 0x4000, scoped, tag = 'scratch operand']
  %s0 = inlined_call_operand.hbm [shape: f32[32,256], index: 0, kind: input, shape index: {}]
  %s1 = inlined_call_operand.hbm [shape: f32[256,128], index: 1, kind: input, shape index: {}]
  %s2 = inlined_call_operand.vmem [shape: f32[8,128], index: 2, kind: input, shape index: {}]
  %s3 = inlined_call_operand.vmem [shape: f32[32,8], index: 3, kind: input, shape index: {}]
  %s4 = inlined_call_operand.vmem [shape: f32[8,32], index: 4, kind: input, shape index: {}]
  %s5 = inlined_call_operand.vmem [shape: f32[8,32], index: 5, kind: input, shape index: {}]
  %s6 = inlined_call_operand.vmem [shape: f32[8,1], index: 6, kind: input, shape index: {}]
  %s7 = inlined_call_operand.vmem [shape: f32[8,1], index: 7, kind: input, shape index: {}]
  %s8 = inlined_call_operand.vmem [shape: f32[4], index: 8, kind: input, shape index: {}]
  %s9 = inlined_call_operand.hbm [shape: f32[8,128], index: 9, kind: output, shape index: {}]
  %s10 = sld [smem:[#allocation0]]
  $region89: #{tpu_custom_call.1} parent=0
    _
  %s12 = ssub.s32 1, %s10
  %s13 = scalar_select 0, %s12, %s10
  $region1: #{tpu_custom_call.1} parent=0
    #allocation5 [shape = 'u8[32768]{0}', space=vmem, size = 0x8000, scoped, tag = 'input window, operand 0']
    #allocation6 [shape = 's32[2]{0}', space=sflag, size = 0x8, scoped, tag = 'scoped memory for tpu_custom_call.1']
    #allocation7 [shape = 's32[2]{0}', space=sflag, size = 0x8, scoped, tag = 'scoped memory for tpu_custom_call.1']
    #allocation8 [shape = 's32[2]{0}', space=sflag, size = 0x8, scoped, tag = 'scoped memory for tpu_custom_call.1']
    #allocation9 [shape = 'u8[131072]{0}', space=vmem, size = 0x20000, scoped, tag = 'input window, operand 1']
    #allocation10 [shape = 's32[2]{0}', space=sflag, size = 0x8, scoped, tag = 'scoped memory for tpu_custom_call.1']
    #allocation11 [shape = 'u8[512]{0}', space=smem, size = 0x200, scoped, tag = 'input window, operand 8, single buffered']
    #allocation12 [shape = 'u8[4096]{0}', space=vmem, size = 0x1000, scoped, tag = 'output window, operand 0, single buffered']
    %14 = vsyncpa [#allocation6], 0
    %s15 = scalar_lea.sflag [#allocation6], 1
    %16 = vsyncpa %s15, 0
    %17 = vsyncpa [#allocation10], 0
    %s18 = scalar_lea.sflag [#allocation10], 1
    %19 = vsyncpa %s18, 0
    %20 = vsyncpa [#allocation8], 0
    %21 = vsyncpa [#allocation7], 0
    loop: start=0, step=1, limit=4
    $region2: #{tpu_custom_call.1} parent=1 // loop_pre_header
      _
    $region3: #{tpu_custom_call.1} parent=1 // loop_header
      %s23 = sphi 0, %s27
      %p24 = scmp.ge.s32.totalorder %s23, 4
      %s33 = sphi 0, %s35
      %s36 = sphi 0, %s33
      %s37 = sphi 0, %s36
      %s53 = sphi 0, %s37
      %s59 = sphi 0, %s61
      %s62 = sphi 0, %s59
      %s63 = sphi 0, %s62
      %s79 = sphi 0, %s63
      %s83 = sphi 0, %s83
      %s85 = sphi 0, %s83
      %s86 = sphi 0, %s85
      %s100 = sphi 0, %s86
      %s104 = sphi 0, %s104
      %s106 = sphi 0, %s104
      %s107 = sphi 0, %s106
      %s121 = sphi 0, %s107
      %s125 = sphi 0, %s125
      %s127 = sphi 0, %s125
      %s128 = sphi 0, %s127
      %s142 = sphi 0, %s128
      %s146 = sphi 0, %s146
      %s148 = sphi 0, %s146
      %s149 = sphi 0, %s148
      %s163 = sphi 0, %s149
      %s167 = sphi 0, %s167
      %s169 = sphi 0, %s167
      %s170 = sphi 0, %s169
      %s184 = sphi 0, %s170
      %s188 = sphi 0, %s188
      %s190 = sphi 0, %s188
      %s191 = sphi 0, %s190
      %s205 = sphi 0, %s191
      %s209 = sphi 0, %s209
      %s211 = sphi 0, %s209
      %s212 = sphi 0, %s211
      %s226 = sphi 0, %s212
      %s230 = sphi 0, %s230
      %s232 = sphi 0, %s230
      %s233 = sphi 0, %s232
      %s247 = sphi 0, %s233
    $region4: #{tpu_custom_call.1} parent=1 // loop_header_branch
      %26 = sbr.rel (%p24) target = $region8
    $region5: #{tpu_custom_call.1} parent=1 // loop_body
      %s28 = ssub.s32 %s23, 1
      %s29 = ssub.s32 %s23, 2
      %s30 = sadd.s32 %s23, 1
      %s31 = ssub.s32 %s23, %s30
      %p32 = scmp.eq.s32.totalorder %s31, 0
      %s34 = sadd.s32 %s33, 1
      %s35 = scalar_select %p32, %s33, %s34
      %p38 = pneg %p32
      %p39 = scmp.eq.s32.totalorder %s23, 1
      %p40 = por %p38, %p39
      %p41 = scmp.ne.s32.totalorder %s33, %s36
      %p42 = scmp.eq.s32.totalorder %s23, 0
      %p43 = por %p41, %p42
      %p44 = scmp.ne.s32.totalorder %s33, %s36
      %p45 = scmp.eq.s32.totalorder %s28, 1
      %p46 = por %p44, %p45
      %p47 = scmp.ne.s32.totalorder %s36, %s37
      %p48 = scmp.eq.s32.totalorder %s28, 0
      %p49 = por %p47, %p48
      %p50 = scmp.ne.s32.totalorder %s36, %s37
      %p51 = scmp.eq.s32.totalorder %s29, 1
      %p52 = por %p50, %p51
      %p54 = scmp.ne.s32.totalorder %s37, %s53
      %p55 = scmp.eq.s32.totalorder %s29, 0
      %p56 = por %p54, %p55
      %s57 = ssub.s32 %s23, %s30
      %p58 = scmp.eq.s32.totalorder %s57, 0
      %s60 = sadd.s32 %s59, 1
      %s61 = scalar_select %p58, %s59, %s60
      %p64 = pneg %p58
      %p65 = scmp.eq.s32.totalorder %s23, 1
      %p66 = por %p64, %p65
      %p67 = scmp.ne.s32.totalorder %s59, %s62
      %p68 = scmp.eq.s32.totalorder %s23, 0
      %p69 = por %p67, %p68
      %p70 = scmp.ne.s32.totalorder %s59, %s62
      %p71 = scmp.eq.s32.totalorder %s28, 1
      %p72 = por %p70, %p71
      %p73 = scmp.ne.s32.totalorder %s62, %s63
      %p74 = scmp.eq.s32.totalorder %s28, 0
      %p75 = por %p73, %p74
      %p76 = scmp.ne.s32.totalorder %s62, %s63
      %p77 = scmp.eq.s32.totalorder %s29, 1
      %p78 = por %p76, %p77
      %p80 = scmp.ne.s32.totalorder %s63, %s79
      %p81 = scmp.eq.s32.totalorder %s29, 0
      %p82 = por %p80, %p81
      %s84 = sadd.s32 %s83, 1
      %p87 = scmp.eq.s32.totalorder %s23, 1
      %p88 = scmp.ne.s32.totalorder %s83, %s85
      %p89 = scmp.eq.s32.totalorder %s23, 0
      %p90 = por %p88, %p89
      %p91 = scmp.ne.s32.totalorder %s83, %s85
      %p92 = scmp.eq.s32.totalorder %s28, 1
      %p93 = por %p91, %p92
      %p94 = scmp.ne.s32.totalorder %s85, %s86
      %p95 = scmp.eq.s32.totalorder %s28, 0
      %p96 = por %p94, %p95
      %p97 = scmp.ne.s32.totalorder %s85, %s86
      %p98 = scmp.eq.s32.totalorder %s29, 1
      %p99 = por %p97, %p98
      %p101 = scmp.ne.s32.totalorder %s86, %s100
      %p102 = scmp.eq.s32.totalorder %s29, 0
      %p103 = por %p101, %p102
      %s105 = sadd.s32 %s104, 1
      %p108 = scmp.eq.s32.totalorder %s23, 1
      %p109 = scmp.ne.s32.totalorder %s104, %s106
      %p110 = scmp.eq.s32.totalorder %s23, 0
      %p111 = por %p109, %p110
      %p112 = scmp.ne.s32.totalorder %s104, %s106
      %p113 = scmp.eq.s32.totalorder %s28, 1
      %p114 = por %p112, %p113
      %p115 = scmp.ne.s32.totalorder %s106, %s107
      %p116 = scmp.eq.s32.totalorder %s28, 0
      %p117 = por %p115, %p116
      %p118 = scmp.ne.s32.totalorder %s106, %s107
      %p119 = scmp.eq.s32.totalorder %s29, 1
      %p120 = por %p118, %p119
      %p122 = scmp.ne.s32.totalorder %s107, %s121
      %p123 = scmp.eq.s32.totalorder %s29, 0
      %p124 = por %p122, %p123
      %s126 = sadd.s32 %s125, 1
      %p129 = scmp.eq.s32.totalorder %s23, 1
      %p130 = scmp.ne.s32.totalorder %s125, %s127
      %p131 = scmp.eq.s32.totalorder %s23, 0
      %p132 = por %p130, %p131
      %p133 = scmp.ne.s32.totalorder %s125, %s127
      %p134 = scmp.eq.s32.totalorder %s28, 1
      %p135 = por %p133, %p134
      %p136 = scmp.ne.s32.totalorder %s127, %s128
      %p137 = scmp.eq.s32.totalorder %s28, 0
      %p138 = por %p136, %p137
      %p139 = scmp.ne.s32.totalorder %s127, %s128
      %p140 = scmp.eq.s32.totalorder %s29, 1
      %p141 = por %p139, %p140
      %p143 = scmp.ne.s32.totalorder %s128, %s142
      %p144 = scmp.eq.s32.totalorder %s29, 0
      %p145 = por %p143, %p144
      %s147 = sadd.s32 %s146, 1
      %p150 = scmp.eq.s32.totalorder %s23, 1
      %p151 = scmp.ne.s32.totalorder %s146, %s148
      %p152 = scmp.eq.s32.totalorder %s23, 0
      %p153 = por %p151, %p152
      %p154 = scmp.ne.s32.totalorder %s146, %s148
      %p155 = scmp.eq.s32.totalorder %s28, 1
      %p156 = por %p154, %p155
      %p157 = scmp.ne.s32.totalorder %s148, %s149
      %p158 = scmp.eq.s32.totalorder %s28, 0
      %p159 = por %p157, %p158
      %p160 = scmp.ne.s32.totalorder %s148, %s149
      %p161 = scmp.eq.s32.totalorder %s29, 1
      %p162 = por %p160, %p161
      %p164 = scmp.ne.s32.totalorder %s149, %s163
      %p165 = scmp.eq.s32.totalorder %s29, 0
      %p166 = por %p164, %p165
      %s168 = sadd.s32 %s167, 1
      %p171 = scmp.eq.s32.totalorder %s23, 1
      %p172 = scmp.ne.s32.totalorder %s167, %s169
      %p173 = scmp.eq.s32.totalorder %s23, 0
      %p174 = por %p172, %p173
      %p175 = scmp.ne.s32.totalorder %s167, %s169
      %p176 = scmp.eq.s32.totalorder %s28, 1
      %p177 = por %p175, %p176
      %p178 = scmp.ne.s32.totalorder %s169, %s170
      %p179 = scmp.eq.s32.totalorder %s28, 0
      %p180 = por %p178, %p179
      %p181 = scmp.ne.s32.totalorder %s169, %s170
      %p182 = scmp.eq.s32.totalorder %s29, 1
      %p183 = por %p181, %p182
      %p185 = scmp.ne.s32.totalorder %s170, %s184
      %p186 = scmp.eq.s32.totalorder %s29, 0
      %p187 = por %p185, %p186
      %s189 = sadd.s32 %s188, 1
      %p192 = scmp.eq.s32.totalorder %s23, 1
      %p193 = scmp.ne.s32.totalorder %s188, %s190
      %p194 = scmp.eq.s32.totalorder %s23, 0
      %p195 = por %p193, %p194
      %p196 = scmp.ne.s32.totalorder %s188, %s190
      %p197 = scmp.eq.s32.totalorder %s28, 1
      %p198 = por %p196, %p197
      %p199 = scmp.ne.s32.totalorder %s190, %s191
      %p200 = scmp.eq.s32.totalorder %s28, 0
      %p201 = por %p199, %p200
      %p202 = scmp.ne.s32.totalorder %s190, %s191
      %p203 = scmp.eq.s32.totalorder %s29, 1
      %p204 = por %p202, %p203
      %p206 = scmp.ne.s32.totalorder %s191, %s205
      %p207 = scmp.eq.s32.totalorder %s29, 0
      %p208 = por %p206, %p207
      %s210 = sadd.s32 %s209, 1
      %p213 = scmp.eq.s32.totalorder %s23, 1
      %p214 = scmp.ne.s32.totalorder %s209, %s211
      %p215 = scmp.eq.s32.totalorder %s23, 0
      %p216 = por %p214, %p215
      %p217 = scmp.ne.s32.totalorder %s209, %s211
      %p218 = scmp.eq.s32.totalorder %s28, 1
      %p219 = por %p217, %p218
      %p220 = scmp.ne.s32.totalorder %s211, %s212
      %p221 = scmp.eq.s32.totalorder %s28, 0
      %p222 = por %p220, %p221
      %p223 = scmp.ne.s32.totalorder %s211, %s212
      %p224 = scmp.eq.s32.totalorder %s29, 1
      %p225 = por %p223, %p224
      %p227 = scmp.ne.s32.totalorder %s212, %s226
      %p228 = scmp.eq.s32.totalorder %s29, 0
      %p229 = por %p227, %p228
      %s231 = sadd.s32 %s230, 1
      %p234 = scmp.eq.s32.totalorder %s23, 1
      %p235 = scmp.ne.s32.totalorder %s230, %s232
      %p236 = scmp.eq.s32.totalorder %s23, 0
      %p237 = por %p235, %p236
      %p238 = scmp.ne.s32.totalorder %s230, %s232
      %p239 = scmp.eq.s32.totalorder %s28, 1
      %p240 = por %p238, %p239
      %p241 = scmp.ne.s32.totalorder %s232, %s233
      %p242 = scmp.eq.s32.totalorder %s28, 0
      %p243 = por %p241, %p242
      %p244 = scmp.ne.s32.totalorder %s232, %s233
      %p245 = scmp.eq.s32.totalorder %s29, 1
      %p246 = por %p244, %p245
      %p248 = scmp.ne.s32.totalorder %s233, %s247
      %p249 = scmp.eq.s32.totalorder %s29, 0
      %p250 = por %p248, %p249
      %p251 = scmp.le.s32.totalorder 1, %s23
      %p252 = scmp.lt.s32.totalorder %s23, 3
      %p253 = pnand %p251, %p252
      %p254 = pneg %p253
      // Predicated region
      $region9: #{tpu_custom_call.1} parent=5 // pred_check
        _
      $region10: #{tpu_custom_call.1} parent=5 // pred_check_branch
        %256 = sbr.rel (%p253) target = $region12
      $region11: #{tpu_custom_call.1} parent=5 // pred_region
        %s257 = ssub.s32 %s23, 1
        // Predicated region
        $region13: #{tpu_custom_call.1} parent=11 // pred_check
          %p258 = pneg %p96
        $region14: #{tpu_custom_call.1} parent=11 // pred_check_branch
          %260 = sbr.rel (%p258) target = $region16
        $region15: #{tpu_custom_call.1} parent=11 // pred_region
          _
        $region16: #{tpu_custom_call.1} parent=11 // pred_fallthru
          _
        // Predicated region
        $region17: #{tpu_custom_call.1} parent=11 // pred_check
          %p261 = pneg %p117
        $region18: #{tpu_custom_call.1} parent=11 // pred_check_branch
          %263 = sbr.rel (%p261) target = $region20
        $region19: #{tpu_custom_call.1} parent=11 // pred_region
          _
        $region20: #{tpu_custom_call.1} parent=11 // pred_fallthru
          _
        // Predicated region
        $region21: #{tpu_custom_call.1} parent=11 // pred_check
          %p264 = pneg %p138
        $region22: #{tpu_custom_call.1} parent=11 // pred_check_branch
          %266 = sbr.rel (%p264) target = $region24
        $region23: #{tpu_custom_call.1} parent=11 // pred_region
          _
        $region24: #{tpu_custom_call.1} parent=11 // pred_fallthru
          _
        // Predicated region
        $region25: #{tpu_custom_call.1} parent=11 // pred_check
          %p267 = pneg %p159
        $region26: #{tpu_custom_call.1} parent=11 // pred_check_branch
          %269 = sbr.rel (%p267) target = $region28
        $region27: #{tpu_custom_call.1} parent=11 // pred_region
          _
        $region28: #{tpu_custom_call.1} parent=11 // pred_fallthru
          _
        // Predicated region
        $region29: #{tpu_custom_call.1} parent=11 // pred_check
          %p270 = pneg %p180
        $region30: #{tpu_custom_call.1} parent=11 // pred_check_branch
          %272 = sbr.rel (%p270) target = $region32
        $region31: #{tpu_custom_call.1} parent=11 // pred_region
          _
        $region32: #{tpu_custom_call.1} parent=11 // pred_fallthru
          _
        // Predicated region
        $region33: #{tpu_custom_call.1} parent=11 // pred_check
          %p273 = pneg %p201
        $region34: #{tpu_custom_call.1} parent=11 // pred_check_branch
          %275 = sbr.rel (%p273) target = $region36
        $region35: #{tpu_custom_call.1} parent=11 // pred_region
          _
        $region36: #{tpu_custom_call.1} parent=11 // pred_fallthru
          _
        // Predicated region
        $region37: #{tpu_custom_call.1} parent=11 // pred_check
          %p276 = pneg %p222
        $region38: #{tpu_custom_call.1} parent=11 // pred_check_branch
          %278 = sbr.rel (%p276) target = $region40
        $region39: #{tpu_custom_call.1} parent=11 // pred_region
          %280 = vsyncadd [#allocation8], 0
          %s282 = sshll.u32 %s8, 4
          %s283 = int_to_ptr.vmem [resolvable:$true] %s282
          %285 = dma.vmem_to_smem %s283, 16, [#allocation11], [#allocation8]
        $region40: #{tpu_custom_call.1} parent=11 // pred_fallthru
          _
      $region12: #{tpu_custom_call.1} parent=5 // pred_fallthru
        _
      %p286 = scmp.lt.s32.totalorder %s23, 2
      // Predicated region
      $region41: #{tpu_custom_call.1} parent=5 // pred_check
        %p287 = pneg %p286
      $region42: #{tpu_custom_call.1} parent=5 // pred_check_branch
        %289 = sbr.rel (%p287) target = $region44
      $region43: #{tpu_custom_call.1} parent=5 // pred_region
        // Predicated region
        $region45: #{tpu_custom_call.1} parent=43 // pred_check
          %p290 = pneg %p43
        $region46: #{tpu_custom_call.1} parent=43 // pred_check_branch
          %292 = sbr.rel (%p290) target = $region48
        $region47: #{tpu_custom_call.1} parent=43 // pred_region
          %s293 = sand.u32 %s33, 1
          %s294 = scalar_lea.sflag [#allocation6], %s293
          %s295 = sand.u32 %s33, 1
          %s296 = smul.addr %s295, 32
          %s297 = scalar_lea.vmem [#allocation5], %s296
          %299 = vsyncadd %s294, 0
          %s300 = smul.addr %s23, 8
          %s301 = scalar_lea.hbm %s0, %s300
          %s302 = sshll.u32 %s301, 4
          %s303 = int_to_ptr.hbm [resolvable:$true] %s302
          %s304 = sshll.u32 %s297, 4
          %s305 = int_to_ptr.vmem [resolvable:$true] %s304
          %310 = dma.hbm_to_vmem [thread:$0]  %s303, 512, %s305, %s294, 256, 128, 8
        $region48: #{tpu_custom_call.1} parent=43 // pred_fallthru
          _
        // Predicated region
        $region49: #{tpu_custom_call.1} parent=43 // pred_check
          %p311 = pneg %p69
        $region50: #{tpu_custom_call.1} parent=43 // pred_check_branch
          %313 = sbr.rel (%p311) target = $region52
        $region51: #{tpu_custom_call.1} parent=43 // pred_region
          %s314 = sand.u32 %s59, 1
          %s315 = scalar_lea.sflag [#allocation10], %s314
          %s316 = sand.u32 %s59, 1
          %s317 = smul.addr %s316, 128
          %s318 = scalar_lea.vmem [#allocation9], %s317
          %s319 = smul.u32 16, %s23
          %321 = vsyncadd %s315, 0
          %s322 = smul.addr %s319, 8
          %s323 = scalar_lea.hbm %s1, %s322
          %s324 = sshll.u32 %s323, 4
          %s325 = int_to_ptr.hbm [resolvable:$true] %s324
          %s326 = sshll.u32 %s318, 4
          %s327 = int_to_ptr.vmem [resolvable:$true] %s326
          %332 = dma.hbm_to_vmem [thread:$0]  %s325, 2048, %s327, %s315, 128, 128, 8
        $region52: #{tpu_custom_call.1} parent=43 // pred_fallthru
          _
      $region44: #{tpu_custom_call.1} parent=5 // pred_fallthru
        _
      %p333 = scmp.le.s32.totalorder 1, %s23
      %p334 = scmp.lt.s32.totalorder %s23, 3
      %p335 = pnand %p333, %p334
      %p336 = pneg %p335
      // Predicated region
      $region53: #{tpu_custom_call.1} parent=5 // pred_check
        _
      $region54: #{tpu_custom_call.1} parent=5 // pred_check_branch
        %338 = sbr.rel (%p335) target = $region56
      $region55: #{tpu_custom_call.1} parent=5 // pred_region
        %s339 = ssub.s32 %s23, 1
        %s340 = sand.u32 %s36, 1
        %s341 = scalar_lea.sflag [#allocation6], %s340
        %s342 = sand.u32 %s36, 1
        %s343 = smul.addr %s342, 32
        %s344 = scalar_lea.vmem [#allocation5], %s343
        // Predicated region
        $region57: #{tpu_custom_call.1} parent=55 // pred_check
          %p345 = pneg %p49
        $region58: #{tpu_custom_call.1} parent=55 // pred_check_branch
          %347 = sbr.rel (%p345) target = $region60
        $region59: #{tpu_custom_call.1} parent=55 // pred_region
          %349 = dma.done %s341, 512
        $region60: #{tpu_custom_call.1} parent=55 // pred_fallthru
          _
        %s350 = sand.u32 %s62, 1
        %s351 = scalar_lea.sflag [#allocation10], %s350
        %s352 = sand.u32 %s62, 1
        %s353 = smul.addr %s352, 128
        %s354 = scalar_lea.vmem [#allocation9], %s353
        // Predicated region
        $region61: #{tpu_custom_call.1} parent=55 // pred_check
          %p355 = pneg %p75
        $region62: #{tpu_custom_call.1} parent=55 // pred_check_branch
          %357 = sbr.rel (%p355) target = $region64
        $region63: #{tpu_custom_call.1} parent=55 // pred_region
          %359 = dma.done %s351, 2048
        $region64: #{tpu_custom_call.1} parent=55 // pred_fallthru
          _
        // Predicated region
        $region65: #{tpu_custom_call.1} parent=55 // pred_check
          %p360 = pneg %p222
        $region66: #{tpu_custom_call.1} parent=55 // pred_check_branch
          %362 = sbr.rel (%p360) target = $region68
        $region67: #{tpu_custom_call.1} parent=55 // pred_region
          %364 = dma.done [#allocation8], 16
        $region68: #{tpu_custom_call.1} parent=55 // pred_fallthru
          _
        %365 = sfence
        %s366 = sand.u32 %s36, 1
        %s367 = scalar_lea.sflag [#allocation6], %s366
        %s368 = sand.u32 %s36, 1
        %s369 = smul.addr %s368, 32
        %s370 = scalar_lea.vmem [#allocation5], %s369
        %p371 = pneg %p49
        %p372 = pneg %p46
        %s373 = sand.u32 %s62, 1
        %s374 = scalar_lea.sflag [#allocation10], %s373
        %s375 = sand.u32 %s62, 1
        %s376 = smul.addr %s375, 128
        %s377 = scalar_lea.vmem [#allocation9], %s376
        %p378 = pneg %p75
        %p379 = pneg %p72
        %p380 = pneg %p96
        %p381 = pneg %p93
        %p382 = pneg %p117
        %p383 = pneg %p114
        %p384 = pneg %p138
        %p385 = pneg %p135
        %p386 = pneg %p159
        %p387 = pneg %p156
        %p388 = pneg %p180
        %p389 = pneg %p177
        %p390 = pneg %p201
        %p391 = pneg %p198
        %p392 = pneg %p222
        %p393 = pneg %p219
        %p394 = pneg %p243
        %p395 = pneg %p240
        %s396 = smul.u32 16, %s28
        %p397 = scmp.eq.s32.totalorder %s28, 0
        // Predicated region
        $region69: #{tpu_custom_call.1} parent=55 // pred_check
          %p398 = pneg %p397
        $region70: #{tpu_custom_call.1} parent=55 // pred_check_branch
          %400 = sbr.rel (%p398) target = $region72
        $region71: #{tpu_custom_call.1} parent=55 // pred_region
          %vm401 = vcmask 7168
          %402 = vst.msk [vmem:[#allocation2] sm:$0xff] %vm401, -inf
          %403 = vst.msk [vmem:[#allocation2 + $0x8] sm:$0xff] %vm401, -inf
          %404 = vst.msk [vmem:[#allocation2 + $0x10] sm:$0xff] %vm401, -inf
          %405 = vst.msk [vmem:[#allocation2 + $0x18] sm:$0xff] %vm401, -inf
          %406 = vst.msk [vmem:[#allocation3] sm:$0xff] %vm401, 0.0
          %407 = vst.msk [vmem:[#allocation3 + $0x8] sm:$0xff] %vm401, 0.0
          %408 = vst.msk [vmem:[#allocation3 + $0x10] sm:$0xff] %vm401, 0.0
          %409 = vst.msk [vmem:[#allocation3 + $0x18] sm:$0xff] %vm401, 0.0
          %410 = vst [vmem:[#allocation4] sm:$0xff] 0.0
          %411 = vst [vmem:[#allocation4 + $0x8] sm:$0xff] 0.0
          %412 = vst [vmem:[#allocation4 + $0x10] sm:$0xff] 0.0
          %413 = vst [vmem:[#allocation4 + $0x18] sm:$0xff] 0.0
        $region72: #{tpu_custom_call.1} parent=55 // pred_fallthru
          _
        %v414 = vld [vmem:[%s354] sm:$0xff]
        %v415 = vld [vmem:[%s354 + $0x8] sm:$0xff]
        %v416 = vld [vmem:[%s354 + $0x10] sm:$0xff]
        %v417 = vld [vmem:[%s354 + $0x18] sm:$0xff]
        %v418 = vld [vmem:[%s354 + $0x20] sm:$0xff]
        %v419 = vld [vmem:[%s354 + $0x28] sm:$0xff]
        %v420 = vld [vmem:[%s354 + $0x30] sm:$0xff]
        %v421 = vld [vmem:[%s354 + $0x38] sm:$0xff]
        %v422 = vld [vmem:[%s354 + $0x40] sm:$0xff]
        %v423 = vld [vmem:[%s354 + $0x48] sm:$0xff]
        %v424 = vld [vmem:[%s354 + $0x50] sm:$0xff]
        %v425 = vld [vmem:[%s354 + $0x58] sm:$0xff]
        %v426 = vld [vmem:[%s354 + $0x60] sm:$0xff]
        %v427 = vld [vmem:[%s354 + $0x68] sm:$0xff]
        %v428 = vld [vmem:[%s354 + $0x70] sm:$0xff]
        %v429 = vld [vmem:[%s354 + $0x78] sm:$0xff]
        %v430 = vld [vmem:[%s2] sm:$0xff]
        %431 = vmatpush.xpose.msra.mxu0 %v429
        %432 = vmatpush.xpose.msra.mxu0 %v428
        %433 = vmatpush.xpose.msra.mxu0 %v427
        %434 = vmatpush.xpose.msra.mxu0 %v426
        %435 = vmatpush.xpose.msra.mxu0 %v425
        %436 = vmatpush.xpose.msra.mxu0 %v424
        %437 = vmatpush.xpose.msra.mxu0 %v423
        %438 = vmatpush.xpose.msra.mxu0 %v422
        %439 = vmatpush.xpose.msra.mxu0 %v421
        %440 = vmatpush.xpose.msra.mxu0 %v420
        %441 = vmatpush.xpose.msra.mxu0 %v419
        %442 = vmatpush.xpose.msra.mxu0 %v418
        %443 = vmatpush.xpose.msra.mxu0 %v417
        %444 = vmatpush.xpose.msra.mxu0 %v416
        %445 = vmatpush.xpose.msra.mxu0 %v415
        %446 = vmatpush.xpose.msra.mxu0 %v414
        %447 = vmatmul.f32.gmra.mxu0 %v430
        %v448 = vpop.f32.mrf.mxu0
        %v449 = vadd.f32 0.0, %v448
        %450 = vdwg.mxu0
        %v451 = vld [vmem:[%s3] sm:$0xff]
        %v452 = vld [vmem:[%s3 + $0x8] sm:$0xff]
        %v453 = vld [vmem:[%s3 + $0x10] sm:$0xff]
        %v454 = vld [vmem:[%s3 + $0x18] sm:$0xff]
        %vm455 = vcmask 64512
        %v457 = vsel %vm455, %v451, 0
        %v460 = vsel %vm455, %v452, 0
        %v463 = vsel %vm455, %v453, 0
        %v466 = vsel %vm455, %v454, 0
        %468 = vmatpush.msra.mxu0 0.0
        %469 = vmatpush.msra.mxu0 0.0
        %470 = vmatpush.msra.mxu0 0.0
        %471 = vmatpush.msra.mxu0 0.0
        %472 = vmatpush.msra.mxu0 0.0
        %473 = vmatpush.msra.mxu0 0.0
        %474 = vmatpush.msra.mxu0 0.0
        %475 = vmatpush.msra.mxu0 0.0
        %476 = vmatpush.msra.mxu0 0.0
        %477 = vmatpush.msra.mxu0 0.0
        %478 = vmatpush.msra.mxu0 0.0
        %479 = vmatpush.msra.mxu0 0.0
        %480 = vmatpush.msra.mxu0 0.0
        %481 = vmatpush.msra.mxu0 0.0
        %482 = vmatpush.msra.mxu0 0.0
        %483 = vmatpush.msra.mxu0 %v449
        %484 = vmatmul.f32.gmra.mxu0 %v457
        %v485 = vpop.f32.mrf.mxu0
        %v486 = vadd.f32 0.0, %v485
        %487 = vmatmul.f32.gmra.mxu0 %v460
        %v488 = vpop.f32.mrf.mxu0
        %v489 = vadd.f32 0.0, %v488
        %490 = vmatmul.f32.gmra.mxu0 %v463
        %v491 = vpop.f32.mrf.mxu0
        %v492 = vadd.f32 0.0, %v491
        %493 = vmatmul.f32.gmra.mxu0 %v466
        %v494 = vpop.f32.mrf.mxu0
        %v495 = vadd.f32 0.0, %v494
        %496 = vdwg.mxu0
        %v497 = vld [vmem:[%s344] sm:$0xff]
        %v498 = vld [vmem:[%s344 + $0x8] sm:$0xff]
        %v499 = vld [vmem:[%s344 + $0x10] sm:$0xff]
        %v500 = vld [vmem:[%s344 + $0x18] sm:$0xff]
        %v501 = vadd.f32 %v497, %v486
        %v502 = vadd.f32 %v498, %v489
        %v503 = vadd.f32 %v499, %v492
        %v504 = vadd.f32 %v500, %v495
        %v505 = vld [vmem:[#allocation2] sm:$0xff]
        %v506 = vld [vmem:[#allocation2 + $0x8] sm:$0xff]
        %v507 = vld [vmem:[#allocation2 + $0x10] sm:$0xff]
        %v508 = vld [vmem:[#allocation2 + $0x18] sm:$0xff]
        %509 = vmax.xlane.f32.xlu0 %v501
        %v510 = vpop.xlane.xlu0 %509
        %511 = vmax.xlane.f32.xlu0 %v502
        %v512 = vpop.xlane.xlu0 %511
        %513 = vmax.xlane.f32.xlu0 %v503
        %v514 = vpop.xlane.xlu0 %513
        %515 = vmax.xlane.f32.xlu0 %v504
        %v516 = vpop.xlane.xlu0 %515
        %v517 = vmax.f32 %v505, %v510
        %v518 = vmax.f32 %v506, %v512
        %v519 = vmax.f32 %v507, %v514
        %v520 = vmax.f32 %v508, %v516
        %v521 = vsub.f32 %v505, %v517
        %v522 = vsub.f32 %v506, %v518
        %v523 = vsub.f32 %v507, %v519
        %v524 = vsub.f32 %v508, %v520
        %v525 = vmul.f32 %v521, 1.442695
        %v526 = vpow.pop %v525
        %v527 = vmul.f32 %v522, 1.442695
        %v528 = vpow.pop %v527
        %v529 = vmul.f32 %v523, 1.442695
        %v530 = vpow.pop %v529
        %v531 = vmul.f32 %v524, 1.442695
        %v532 = vpow.pop %v531
        %534 = vset.pattern.permute.xlu0 0
        %535 = vperm.xlu0 %534, %v517
        %v536 = vpop.permute.xlu0 %535
        %539 = vset.pattern.permute.xlu0 0
        %540 = vperm.xlu0 %539, %v518
        %v541 = vpop.permute.xlu0 %540
        %544 = vset.pattern.permute.xlu0 0
        %545 = vperm.xlu0 %544, %v519
        %v546 = vpop.permute.xlu0 %545
        %549 = vset.pattern.permute.xlu0 0
        %550 = vperm.xlu0 %549, %v520
        %v551 = vpop.permute.xlu0 %550
        %v553 = vsub.f32 %v501, %v536
        %v554 = vsub.f32 %v502, %v541
        %v555 = vsub.f32 %v503, %v546
        %v556 = vsub.f32 %v504, %v551
        %v557 = vmul.f32 %v553, 1.442695
        %v558 = vpow.pop %v557
        %v559 = vmul.f32 %v554, 1.442695
        %v560 = vpow.pop %v559
        %v561 = vmul.f32 %v555, 1.442695
        %v562 = vpow.pop %v561
        %v563 = vmul.f32 %v556, 1.442695
        %v564 = vpow.pop %v563
        %v565 = vld [vmem:[#allocation3] sm:$0xff]
        %v566 = vld [vmem:[#allocation3 + $0x8] sm:$0xff]
        %v567 = vld [vmem:[#allocation3 + $0x10] sm:$0xff]
        %v568 = vld [vmem:[#allocation3 + $0x18] sm:$0xff]
        %v569 = vmul.f32 %v526, %v565
        %v570 = vmul.f32 %v528, %v566
        %v571 = vmul.f32 %v530, %v567
        %v572 = vmul.f32 %v532, %v568
        %573 = vadd.xlane.f32.xlu0 %v558
        %v574 = vpop.xlane.xlu0 %573
        %575 = vadd.xlane.f32.xlu0 %v560
        %v576 = vpop.xlane.xlu0 %575
        %577 = vadd.xlane.f32.xlu0 %v562
        %v578 = vpop.xlane.xlu0 %577
        %579 = vadd.xlane.f32.xlu0 %v564
        %v580 = vpop.xlane.xlu0 %579
        %v581 = vadd.f32 %v569, %v574
        %v582 = vadd.f32 %v570, %v576
        %v583 = vadd.f32 %v571, %v578
        %v584 = vadd.f32 %v572, %v580
        %vm585 = vcmask 7168
        %586 = vst.msk [vmem:[#allocation3] sm:$0xff] %vm585, %v581
        %587 = vst.msk [vmem:[#allocation3 + $0x8] sm:$0xff] %vm585, %v582
        %588 = vst.msk [vmem:[#allocation3 + $0x10] sm:$0xff] %vm585, %v583
        %589 = vst.msk [vmem:[#allocation3 + $0x18] sm:$0xff] %vm585, %v584
        %v590 = vld [vmem:[#allocation4] sm:$0xff]
        %v591 = vld [vmem:[#allocation4 + $0x8] sm:$0xff]
        %v592 = vld [vmem:[#allocation4 + $0x10] sm:$0xff]
        %v593 = vld [vmem:[#allocation4 + $0x18] sm:$0xff]
        %595 = vset.pattern.permute.xlu0 0
        %596 = vperm.xlu0 %595, %v526
        %v597 = vpop.permute.xlu0 %596
        %600 = vset.pattern.permute.xlu0 0
        %601 = vperm.xlu0 %600, %v528
        %v602 = vpop.permute.xlu0 %601
        %605 = vset.pattern.permute.xlu0 0
        %606 = vperm.xlu0 %605, %v530
        %v607 = vpop.permute.xlu0 %606
        %610 = vset.pattern.permute.xlu0 0
        %611 = vperm.xlu0 %610, %v532
        %v612 = vpop.permute.xlu0 %611
        %v614 = vmul.f32 %v597, %v590
        %v615 = vmul.f32 %v602, %v591
        %v616 = vmul.f32 %v607, %v592
        %v617 = vmul.f32 %v612, %v593
        %618 = vmatpush.msra.mxu0 %v429
        %619 = vmatpush.msra.mxu0 %v428
        %620 = vmatpush.msra.mxu0 %v427
        %621 = vmatpush.msra.mxu0 %v426
        %622 = vmatpush.msra.mxu0 %v425
        %623 = vmatpush.msra.mxu0 %v424
        %624 = vmatpush.msra.mxu0 %v423
        %625 = vmatpush.msra.mxu0 %v422
        %626 = vmatpush.msra.mxu0 %v421
        %627 = vmatpush.msra.mxu0 %v420
        %628 = vmatpush.msra.mxu0 %v419
        %629 = vmatpush.msra.mxu0 %v418
        %630 = vmatpush.msra.mxu0 %v417
        %631 = vmatpush.msra.mxu0 %v416
        %632 = vmatpush.msra.mxu0 %v415
        %633 = vmatpush.msra.mxu0 %v414
        %634 = vmatmul.f32.gmra.mxu0 %v558
        %v635 = vpop.f32.mrf.mxu0
        %v636 = vadd.f32 0.0, %v635
        %637 = vmatmul.f32.gmra.mxu0 %v560
        %v638 = vpop.f32.mrf.mxu0
        %v639 = vadd.f32 0.0, %v638
        %640 = vmatmul.f32.gmra.mxu0 %v562
        %v641 = vpop.f32.mrf.mxu0
        %v642 = vadd.f32 0.0, %v641
        %643 = vmatmul.f32.gmra.mxu0 %v564
        %v644 = vpop.f32.mrf.mxu0
        %v645 = vadd.f32 0.0, %v644
        %646 = vdwg.mxu0
        %v647 = vadd.f32 %v614, %v636
        %v648 = vadd.f32 %v615, %v639
        %v649 = vadd.f32 %v616, %v642
        %v650 = vadd.f32 %v617, %v645
        %651 = vst [vmem:[#allocation4] sm:$0xff] %v647
        %652 = vst [vmem:[#allocation4 + $0x8] sm:$0xff] %v648
        %653 = vst [vmem:[#allocation4 + $0x10] sm:$0xff] %v649
        %654 = vst [vmem:[#allocation4 + $0x18] sm:$0xff] %v650
        %655 = vst.msk [vmem:[#allocation2] sm:$0xff] %vm585, %v517
        %656 = vst.msk [vmem:[#allocation2 + $0x8] sm:$0xff] %vm585, %v518
        %657 = vst.msk [vmem:[#allocation2 + $0x10] sm:$0xff] %vm585, %v519
        %658 = vst.msk [vmem:[#allocation2 + $0x18] sm:$0xff] %vm585, %v520
        %p659 = scmp.eq.s32.totalorder %s28, 1
        // Predicated region
        $region73: #{tpu_custom_call.1} parent=55 // pred_check
          %p660 = pneg %p659
        $region74: #{tpu_custom_call.1} parent=55 // pred_check_branch
          %662 = sbr.rel (%p660) target = $region76
        $region75: #{tpu_custom_call.1} parent=55 // pred_region
          %v663 = vld [vmem:[#allocation4] sm:$0xff]
          %v664 = vld [vmem:[#allocation4 + $0x8] sm:$0xff]
          %v665 = vld [vmem:[#allocation4 + $0x10] sm:$0xff]
          %v666 = vld [vmem:[#allocation4 + $0x18] sm:$0xff]
          %v667 = vld [vmem:[#allocation3] sm:$0xff]
          %v668 = vld [vmem:[#allocation3 + $0x8] sm:$0xff]
          %v669 = vld [vmem:[#allocation3 + $0x10] sm:$0xff]
          %v670 = vld [vmem:[#allocation3 + $0x18] sm:$0xff]
          %v671 = vrcp.pop %v667
          %v672 = vrcp.pop %v668
          %v673 = vrcp.pop %v669
          %v674 = vrcp.pop %v670
          %676 = vset.pattern.permute.xlu0 0
          %677 = vperm.xlu0 %676, %v671
          %v678 = vpop.permute.xlu0 %677
          %681 = vset.pattern.permute.xlu0 0
          %682 = vperm.xlu0 %681, %v672
          %v683 = vpop.permute.xlu0 %682
          %686 = vset.pattern.permute.xlu0 0
          %687 = vperm.xlu0 %686, %v673
          %v688 = vpop.permute.xlu0 %687
          %691 = vset.pattern.permute.xlu0 0
          %692 = vperm.xlu0 %691, %v674
          %v693 = vpop.permute.xlu0 %692
          %v695 = vmul.f32 %v663, %v678
          %v696 = vmul.f32 %v664, %v683
          %v697 = vmul.f32 %v665, %v688
          %v698 = vmul.f32 %v666, %v693
          %699 = vmatpush.xpose.msra.mxu0 0.0
          %700 = vmatpush.xpose.msra.mxu0 0.0
          %701 = vmatpush.xpose.msra.mxu0 0.0
          %702 = vmatpush.xpose.msra.mxu0 0.0
          %703 = vmatpush.xpose.msra.mxu0 0.0
          %704 = vmatpush.xpose.msra.mxu0 0.0
          %705 = vmatpush.xpose.msra.mxu0 0.0
          %706 = vmatpush.xpose.msra.mxu0 0.0
          %707 = vmatpush.xpose.msra.mxu0 0.0
          %708 = vmatpush.xpose.msra.mxu0 0.0
          %709 = vmatpush.xpose.msra.mxu0 0.0
          %710 = vmatpush.xpose.msra.mxu0 0.0
          %711 = vmatpush.xpose.msra.mxu0 %v698
          %712 = vmatpush.xpose.msra.mxu0 %v697
          %713 = vmatpush.xpose.msra.mxu0 %v696
          %714 = vmatpush.xpose.msra.mxu0 %v695
          %715 = vmatmul.f32.gmra.mxu0 %v430
          %v716 = vpop.f32.mrf.mxu0
          %v717 = vadd.f32 0.0, %v716
          %718 = vdwg.mxu0
          %s719 = sld [smem:[#allocation11]]
          %s720 = sld [smem:[#allocation11 + $0x1]]
          %s721 = sld [smem:[#allocation11 + $0x2]]
          %v722 = vld [vmem:[%s4] sm:$0xff]
          %v723 = vstv %s719
          %v724 = vadd.f32 %v717, %v723
          %v725 = vperm.slane %v724, 3
          %v726 = vadd.f32 %v722, %v725
          %vm727 = vcmask 261120
          %v728 = vsel %vm727, %v726, -inf
          %729 = vmax.xlane.f32.xlu0 %v728
          %v730 = vpop.xlane.xlu0 %729
          %v731 = vsub.f32 %v726, %v730
          %v732 = vmul.f32 %v731, 1.442695
          %v733 = vpow.pop %v732
          %v734 = vsel %vm727, %v733, 0.0
          %735 = vadd.xlane.f32.xlu0 %v734
          %v736 = vpop.xlane.xlu0 %735
          %v737 = vrcp.pop %v736
          %v738 = vmul.f32 %v733, %v737
          %v740 = vsel %vm727, %v738, 0
          %742 = vmatpush.msra.mxu0 0.0
          %743 = vmatpush.msra.mxu0 0.0
          %744 = vmatpush.msra.mxu0 0.0
          %745 = vmatpush.msra.mxu0 0.0
          %746 = vmatpush.msra.mxu0 0.0
          %747 = vmatpush.msra.mxu0 0.0
          %748 = vmatpush.msra.mxu0 0.0
          %749 = vmatpush.msra.mxu0 0.0
          %750 = vmatpush.msra.mxu0 0.0
          %751 = vmatpush.msra.mxu0 0.0
          %752 = vmatpush.msra.mxu0 0.0
          %753 = vmatpush.msra.mxu0 0.0
          %754 = vmatpush.msra.mxu0 %v698
          %755 = vmatpush.msra.mxu0 %v697
          %756 = vmatpush.msra.mxu0 %v696
          %757 = vmatpush.msra.mxu0 %v695
          %758 = vmatmul.f32.gmra.mxu0 %v740
          %v759 = vpop.f32.mrf.mxu0
          %v760 = vadd.f32 0.0, %v759
          %761 = vdwg.mxu0
          %v762 = vld [vmem:[%s5] sm:$0xff]
          %v763 = vstv %s720
          %v764 = vadd.f32 %v717, %v763
          %v765 = vperm.slane %v764, 4
          %v766 = vadd.f32 %v762, %v765
          %v767 = vsel %vm727, %v766, -inf
          %768 = vmax.xlane.f32.xlu0 %v767
          %v769 = vpop.xlane.xlu0 %768
          %v770 = vsub.f32 %v766, %v769
          %v771 = vmul.f32 %v770, 1.442695
          %v772 = vpow.pop %v771
          %v773 = vsel %vm727, %v772, 0.0
          %774 = vadd.xlane.f32.xlu0 %v773
          %v775 = vpop.xlane.xlu0 %774
          %v776 = vrcp.pop %v775
          %v777 = vmul.f32 %v772, %v776
          %v779 = vsel %vm727, %v777, 0
          %781 = vmatpush.msra.mxu0 0.0
          %782 = vmatpush.msra.mxu0 0.0
          %783 = vmatpush.msra.mxu0 0.0
          %784 = vmatpush.msra.mxu0 0.0
          %785 = vmatpush.msra.mxu0 0.0
          %786 = vmatpush.msra.mxu0 0.0
          %787 = vmatpush.msra.mxu0 0.0
          %788 = vmatpush.msra.mxu0 0.0
          %789 = vmatpush.msra.mxu0 0.0
          %790 = vmatpush.msra.mxu0 0.0
          %791 = vmatpush.msra.mxu0 0.0
          %792 = vmatpush.msra.mxu0 0.0
          %793 = vmatpush.msra.mxu0 %v698
          %794 = vmatpush.msra.mxu0 %v697
          %795 = vmatpush.msra.mxu0 %v696
          %796 = vmatpush.msra.mxu0 %v695
          %797 = vmatmul.f32.gmra.mxu0 %v779
          %v798 = vpop.f32.mrf.mxu0
          %v799 = vadd.f32 0.0, %v798
          %800 = vdwg.mxu0
          %v801 = vld [vmem:[%s6] sm:$0xff]
          %803 = vset.pattern.permute.xlu0 0
          %804 = vperm.xlu0 %803, %v801
          %v805 = vpop.permute.xlu0 %804
          %v807 = vmul.f32 %v799, %v805
          %v808 = vld [vmem:[%s7] sm:$0xff]
          %810 = vset.pattern.permute.xlu0 0
          %811 = vperm.xlu0 %810, %v808
          %v812 = vpop.permute.xlu0 %811
          %v814 = vmul.f32 %v698, %v812
          %v815 = vperm.slane %v430, 5
          %v816 = vmul.f32 %v760, %v815
          %817 = vadd.xlane.f32.xlu0 %v816
          %v818 = vpop.xlane.xlu0 %817
          %v819 = vstv %s721
          %v820 = vadd.f32 %v818, %v819
          %v821 = vmul.f32 %v807, %v815
          %822 = vadd.xlane.f32.xlu0 %v821
          %v823 = vpop.xlane.xlu0 %822
          %v824 = vadd.f32 %v823, %v819
          %vm825 = vcmp.gt.f32.partialorder %v801, 0.0
          %v826 = vsel %vm825, 0.0, -1e+09
          %v827 = vadd.f32 %v824, %v826
          %v828 = vmul.f32 %v814, %v815
          %829 = vadd.xlane.f32.xlu0 %v828
          %v830 = vpop.xlane.xlu0 %829
          %v831 = vadd.f32 %v830, %v819
          %vm832 = vcmp.gt.f32.partialorder %v808, 0.0
          %v833 = vsel %vm832, 0.0, -1e+09
          %v834 = vadd.f32 %v831, %v833
          %v835 = vmax.f32 %v820, %v827
          %v836 = vmax.f32 %v835, %v834
          %v837 = vsub.f32 %v820, %v836
          %v838 = vmul.f32 %v837, 1.442695
          %v839 = vpow.pop %v838
          %v840 = vsub.f32 %v827, %v836
          %v841 = vmul.f32 %v840, 1.442695
          %v842 = vpow.pop %v841
          %v843 = vsub.f32 %v834, %v836
          %v844 = vmul.f32 %v843, 1.442695
          %v845 = vpow.pop %v844
          %v846 = vadd.f32 %v839, %v842
          %v847 = vadd.f32 %v846, %v845
          %v848 = vrcp.pop %v847
          %850 = vset.pattern.permute.xlu0 0
          %851 = vperm.xlu0 %850, %v839
          %v852 = vpop.permute.xlu0 %851
          %v854 = vmul.f32 %v852, %v760
          %856 = vset.pattern.permute.xlu0 0
          %857 = vperm.xlu0 %856, %v842
          %v858 = vpop.permute.xlu0 %857
          %v860 = vmul.f32 %v858, %v807
          %v861 = vadd.f32 %v854, %v860
          %863 = vset.pattern.permute.xlu0 0
          %864 = vperm.xlu0 %863, %v845
          %v865 = vpop.permute.xlu0 %864
          %v867 = vmul.f32 %v865, %v814
          %v868 = vadd.f32 %v861, %v867
          %870 = vset.pattern.permute.xlu0 0
          %871 = vperm.xlu0 %870, %v848
          %v872 = vpop.permute.xlu0 %871
          %v874 = vmul.f32 %v868, %v872
          %875 = vst [vmem:[#allocation12] sm:$0xff] %v874
        $region76: #{tpu_custom_call.1} parent=55 // pred_fallthru
          _
        // Predicated region
        $region77: #{tpu_custom_call.1} parent=55 // pred_check
          %p876 = pneg %p240
        $region78: #{tpu_custom_call.1} parent=55 // pred_check_branch
          %878 = sbr.rel (%p876) target = $region80
        $region79: #{tpu_custom_call.1} parent=55 // pred_region
          %880 = vsyncadd [#allocation7], 0
          %s882 = sshll.u32 [#allocation12], 4
          %s883 = int_to_ptr.vmem [resolvable:$true] %s882
          %s884 = sshll.u32 %s9, 4
          %s885 = int_to_ptr.hbm [resolvable:$true] %s884
          %887 = dma.vmem_to_hbm [thread:$0]  %s883, 128, %s885, [#allocation7]
        $region80: #{tpu_custom_call.1} parent=55 // pred_fallthru
          _
        // Predicated region
        $region81: #{tpu_custom_call.1} parent=55 // pred_check
          %p888 = pneg %p240
        $region82: #{tpu_custom_call.1} parent=55 // pred_check_branch
          %890 = sbr.rel (%p888) target = $region84
        $region83: #{tpu_custom_call.1} parent=55 // pred_region
          %892 = dma.done [#allocation7], 128
        $region84: #{tpu_custom_call.1} parent=55 // pred_fallthru
          _
      $region56: #{tpu_custom_call.1} parent=5 // pred_fallthru
        _
      %p893 = scmp.le.s32.totalorder 2, %s23
      // Predicated region
      $region85: #{tpu_custom_call.1} parent=5 // pred_check
        %p894 = pneg %p893
      $region86: #{tpu_custom_call.1} parent=5 // pred_check_branch
        %896 = sbr.rel (%p894) target = $region88
      $region87: #{tpu_custom_call.1} parent=5 // pred_region
        %s897 = ssub.s32 %s23, 2
      $region88: #{tpu_custom_call.1} parent=5 // pred_fallthru
        _
    $region6: #{tpu_custom_call.1} parent=1 // loop_footer
      %s27 = sadd.s32 1, %s23
    $region7: #{tpu_custom_call.1} parent=1 // loop_footer_branch
      %22 = sbr.rel target = $region3
    $region8: #{tpu_custom_call.1} parent=1 // loop_exit
      _
    %898 = vsyncpa [#allocation6], 1
    %s899 = scalar_lea.sflag [#allocation6], 1
    %900 = vsyncpa %s899, 1
    %901 = vsyncpa [#allocation10], 1
    %s902 = scalar_lea.sflag [#allocation10], 1
    %903 = vsyncpa %s902, 1
    %904 = vsyncpa [#allocation7], 1
    %s905 = scalar_lea.sflag [#allocation7], 1
    %906 = vsyncpa %s905, 1
    %907 = vsyncpa [#allocation8], 1
    %s908 = scalar_lea.sflag [#allocation8], 1
    %909 = vsyncpa %s908, 1

</llo_original>
